<compile_context>
chip_gen: v5e
topology: v5e:2x2
jax: 0.10.0
libtpu: 0.0.40
codegen_flags: <defaults>
</compile_context>

<pallas_src>
import functools

import jax
import jax.numpy as jnp
from jax.experimental import pallas as pl
from jax.experimental.pallas import tpu as pltpu

_MAX_TILE_N = 16384                 # lane-dense tile cap (multiple of 128)
_VMEM_LIMIT_BYTES = 32 * 1024 * 1024   # safe on v5e/v6e (128 MiB) and v7x (64 MiB)
_TILE_VMEM_BUDGET = 12 * 1024 * 1024   # headroom under the scoped limit


def _round_up(a, b):
    return ((a + b - 1) // b) * b


def _make_kernel(order):
    """Build the fused forward + analytic-derivative kernel for a given order."""

    def kernel(xt_ref, wpre_ref, wc_ref, out_ref):
        # xt_ref   : (dim+1, TN)   coordinates (points on lanes) + ones row (bias)
        # wpre_ref : (hidden, dim+1)  [W1^T | b1]
        # wc_ref   : (rows, hidden)   order-specific constant rows (w2, -2 folded in)
        # out_ref  : (rows, TN)       stacked derivatives, points on lanes
        pre = jnp.dot(wpre_ref[...], xt_ref[...],
                      preferred_element_type=jnp.float32)      # MXU, K = dim+1
        h = jnp.tanh(pre)                                      # EUP
        act = 1.0 - h * h                                      # d tanh / d pre
        if order == 2:
            act = h * act        # (-1/2) d2 tanh / d pre^2 ; -2 and w2 live in wc
        out_ref[...] = jnp.dot(wc_ref[...], act,
                               preferred_element_type=jnp.float32)

    return kernel


@functools.partial(jax.jit, static_argnames=("order",))
def spatial_grads(x, wpre_aug, wc, *, order):
    """Returns (rows, n_pad) stacked spatial derivatives, points on lanes."""
    n, dim = x.shape
    hidden = wpre_aug.shape[0]
    out_rows = wc.shape[0]

    # ---- static tiling arithmetic (shapes concrete at trace time) ----
    n128 = _round_up(max(n, 1), 128)
    # rough f32 VMEM per point: double-buffered in/out tiles + hidden intermediates
    bytes_per_point = 4 * (2 * (dim + 1) + 2 * out_rows + 4 * hidden)
    cap = (_TILE_VMEM_BUDGET // bytes_per_point) // 128 * 128
    cap = max(128, min(_MAX_TILE_N, cap))
    num_tiles = -(-n128 // cap)
    if num_tiles == 1 and n128 >= 256:
        num_tiles = 2            # >=2 grid steps: v7x shards "parallel" across 2 TCs
    tile_n = _round_up(-(-n128 // num_tiles), 128)
    grid_steps = -(-n128 // tile_n)
    n_pad = tile_n * grid_steps

    # Lane-dense input: points on lanes; bias folded in via a ones row; pad N only.
    xt = jnp.concatenate(
        [x.T.astype(jnp.float32), jnp.ones((1, n), jnp.float32)], axis=0)
    xt = jnp.pad(xt, ((0, 0), (0, n_pad - n)))

    flops = n_pad * (2 * hidden * (dim + 1) + 2 * out_rows * hidden + 3 * hidden)
    bytes_accessed = 4 * (n_pad * (dim + 1 + out_rows)
                          + hidden * (dim + 1) + out_rows * hidden)

    out = pl.pallas_call(
        _make_kernel(order),
        out_shape=jax.ShapeDtypeStruct((out_rows, n_pad), jnp.float32),
        grid_spec=pltpu.PrefetchScalarGridSpec(
            num_scalar_prefetch=0,
            grid=(grid_steps,),
            in_specs=[
                pl.BlockSpec((dim + 1, tile_n), lambda i: (0, i)),
                pl.BlockSpec((hidden, dim + 1), lambda i: (0, 0)),
                pl.BlockSpec((out_rows, hidden), lambda i: (0, 0)),
            ],
            out_specs=pl.BlockSpec((out_rows, tile_n), lambda i: (0, i)),
        ),
        compiler_params=pltpu.CompilerParams(
            dimension_semantics=("parallel",),
            vmem_limit_bytes=_VMEM_LIMIT_BYTES),
        cost_estimate=pl.CostEstimate(
            flops=flops,
            transcendentals=n_pad * hidden,
            bytes_accessed=bytes_accessed),
    )(xt, wpre_aug, wc)

    return out  # (rows, n_pad); caller slices rows / valid points (no transpose)


class GradientsAutoDiff:
    """JAX/Pallas analogue of physicsnemo GradientsAutoDiff.

    The differentiable map coordinates -> y is a fixed synthetic tanh MLP; the
    Pallas kernel computes its exact autodiff spatial derivatives (1st order,
    diagonal 2nd order, and mixed 2nd order when requested).
    """

    def __init__(self, invar, dim=3, order=1, return_mixed_derivs=False,
                 hidden=32, key=None):
        assert order < 3, "Derivatives only upto 2nd order are supported"
        if return_mixed_derivs:
            assert dim > 1, "Mixed Derivatives only supported for 2D and 3D"
            assert order == 2, "Mixed Derivatives need order == 2"
        self.invar = invar
        self.dim = dim
        self.order = order
        self.return_mixed_derivs = return_mixed_derivs
        self.hidden = hidden

        if key is None:
            key = jax.random.PRNGKey(0)
        k1, k2, k3 = jax.random.split(key, 3)
        self.w1 = jax.random.normal(k1, (dim, hidden), jnp.float32) * 0.5
        self.b1 = jax.random.normal(k2, (hidden,), jnp.float32) * 0.1
        self.w2 = jax.random.normal(k3, (hidden, 1), jnp.float32) * 0.5
        self.b2 = jnp.zeros((1,), jnp.float32)

        # Pre-packed constant operands (built once).
        # wpre_aug[k, d] = W1[d, k] for d < dim ; wpre_aug[k, dim] = b1[k]
        self.wpre_aug = jnp.concatenate(
            [self.w1.T, self.b1.reshape(hidden, 1)], axis=1).astype(jnp.float32)

        w2v = self.w2[:, 0]
        rows = []
        self.mixed_pairs = []
        if order == 1:
            for a in range(dim):                    # dy/dx_a rows
                rows.append(self.w1[a, :] * w2v)
        else:
            for a in range(dim):                    # d2y/dx_a^2 rows
                rows.append(-2.0 * (self.w1[a, :] ** 2) * w2v)
            if return_mixed_derivs:
                self.mixed_pairs = [(a, b) for a in range(dim)
                                    for b in range(a + 1, dim)]
                for (a, b) in self.mixed_pairs:     # d2y/dx_a dx_b rows
                    rows.append(-2.0 * self.w1[a, :] * self.w1[b, :] * w2v)
        self.wc = jnp.stack(rows, axis=0).astype(jnp.float32)   # (rows, hidden)

    def net(self, x):
        """Reference forward map y = MLP(x), shape (N, 1)."""
        return jnp.tanh(x @ self.w1 + self.b1) @ self.w2 + self.b2

    def __call__(self, input_dict):
        x = input_dict["coordinates"]
        assert x.shape[1] == self.dim, (
            f"Expected shape (N, {self.dim}), but got {x.shape}")
        n = x.shape[0]
        g = spatial_grads(x, self.wpre_aug, self.wc, order=self.order)

        axis_list = ["x", "y", "z"]
        result = {}
        if self.order == 1:
            for a in range(self.dim):
                result[f"{self.invar}__{axis_list[a]}"] = g[a, :n][:, None]
        else:
            for a in range(self.dim):
                result[f"{self.invar}__{axis_list[a]}__{axis_list[a]}"] = (
                    g[a, :n][:, None])
            off = self.dim
            for p, (a, b) in enumerate(self.mixed_pairs):
                v = g[off + p, :n][:, None]
                result[f"{self.invar}__{axis_list[a]}__{axis_list[b]}"] = v
                result[f"{self.invar}__{axis_list[b]}__{axis_list[a]}"] = v
        return result


if __name__ == "__main__":
    key = jax.random.PRNGKey(0)
    kx, kmod = jax.random.split(key)

    N, DIM = 256, 3
    x = jax.random.normal(kx, (N, DIM), jnp.float32)

    m1 = GradientsAutoDiff("u", dim=DIM, order=1, key=kmod)
    y = m1.net(x)                                        # (N, 1), = input_dict["u"]
    out1 = m1({"u": y, "coordinates": x})
    out1 = jax.tree_util.tree_map(jax.block_until_ready, out1)

    m2 = GradientsAutoDiff("u", dim=DIM, order=2, return_mixed_derivs=True,
                           key=kmod)
    out2 = m2({"u": y, "coordinates": x})
    out2 = jax.tree_util.tree_map(jax.block_until_ready, out2)

    # Cross-check against real JAX autodiff of the same map.
    f_scalar = lambda xr: m1.net(xr[None, :])[0, 0]
    ref_g = jax.vmap(jax.grad(f_scalar))(x)              # (N, DIM)
    ref_h = jax.vmap(jax.hessian(f_scalar))(x)           # (N, DIM, DIM)

    ax = ["x", "y", "z"]
    ok = True
    for a in range(DIM):
        ok &= bool(jnp.allclose(out1[f"u__{ax[a]}"][:, 0], ref_g[:, a],
                                atol=2e-4, rtol=2e-4))
        ok &= bool(jnp.allclose(out2[f"u__{ax[a]}__{ax[a]}"][:, 0],
                                ref_h[:, a, a], atol=2e-4, rtol=2e-4))
        for b in range(a + 1, DIM):
            ok &= bool(jnp.allclose(out2[f"u__{ax[a]}__{ax[b]}"][:, 0],
                                    ref_h[:, a, b], atol=2e-4, rtol=2e-4))
    ok &= out1["u__x"].shape == (N, 1) and out2["u__z__z"].shape == (N, 1)
    ok &= out2["u__x__y"].shape == (N, 1)

    if not ok:
        raise RuntimeError("Pallas kernel mismatch vs JAX autodiff reference")
    print("KERNEL_OK")
</pallas_src>

<mosaic_0001>
module attributes {stable_mosaic.version = 11 : i64} {
  func.func @kernel(%arg0: i32, %arg1: memref<4x128xf32, #tpu.memory_space<vmem>>, %arg2: memref<32x4xf32, #tpu.memory_space<vmem>>, %arg3: memref<3x32xf32, #tpu.memory_space<vmem>>, %arg4: memref<3x128xf32, #tpu.memory_space<vmem>>) attributes {dimension_semantics = [#tpu.dimension_semantics<parallel>], iteration_bounds = array<i64: 2>, scalar_prefetch = 0 : i64, scratch_operands = 0 : i64, tpu.core_type = #tpu.core_type<tc>, window_params = [{transform_indices = @transform_0, window_bounds = array<i64: 4, 128>}, {pipeline_mode = #tpu.pipeline_mode<synchronous>, transform_indices = @transform_1, window_bounds = array<i64: 32, 4>}, {pipeline_mode = #tpu.pipeline_mode<synchronous>, transform_indices = @transform_2, window_bounds = array<i64: 3, 32>}, {transform_indices = @transform_3, window_bounds = array<i64: 3, 128>}]} {
    %c0 = arith.constant 0 : index
    %c0_0 = arith.constant 0 : index
    %0 = vector.load %arg2[%c0, %c0_0] : memref<32x4xf32, #tpu.memory_space<vmem>>, vector<32x4xf32>
    %c0_1 = arith.constant 0 : index
    %c0_2 = arith.constant 0 : index
    %1 = vector.load %arg1[%c0_1, %c0_2] : memref<4x128xf32, #tpu.memory_space<vmem>>, vector<4x128xf32>
    %cst = arith.constant dense<0.000000e+00> : vector<32x128xf32>
    %2 = tpu.matmul %0, %1, %cst {dimension_numbers = #tpu.dot_dimension_numbers<[1], [0], [0], [1], [0, 0, 1, 1], [], []>} : vector<32x4xf32>, vector<4x128xf32>, vector<32x128xf32> -> vector<32x128xf32>
    %3 = math.tanh %2 : vector<32x128xf32>
    %4 = arith.mulf %3, %3 : vector<32x128xf32>
    %cst_3 = arith.constant 1.000000e+00 : f32
    %5 = vector.broadcast %cst_3 : f32 to vector<32x128xf32>
    %6 = arith.subf %5, %4 : vector<32x128xf32>
    %c0_4 = arith.constant 0 : index
    %c0_5 = arith.constant 0 : index
    %7 = vector.load %arg3[%c0_4, %c0_5] : memref<3x32xf32, #tpu.memory_space<vmem>>, vector<3x32xf32>
    %cst_6 = arith.constant dense<0.000000e+00> : vector<3x128xf32>
    %8 = tpu.matmul %7, %6, %cst_6 {dimension_numbers = #tpu.dot_dimension_numbers<[1], [0], [0], [1], [0, 0, 1, 1], [], []>} : vector<3x32xf32>, vector<32x128xf32>, vector<3x128xf32> -> vector<3x128xf32>
    %c0_7 = arith.constant 0 : index
    %c0_8 = arith.constant 0 : index
    %9 = vector.load %arg4[%c0_7, %c0_8] : memref<3x128xf32, #tpu.memory_space<vmem>>, vector<3x128xf32>
    tpu.vector_store %arg4[%c0_7, %c0_8], %8 {strides = array<i32>} : memref<3x128xf32, #tpu.memory_space<vmem>>, vector<3x128xf32>,
    return
  }
  func.func @transform_0(%arg0: i32) -> (i32, i32) {
    %c0_i32 = arith.constant 0 : i32
    %c0_i32_0 = arith.constant 0 : i32
    return %c0_i32, %arg0 : i32, i32
  }
  func.func @transform_1(%arg0: i32) -> (i32, i32) {
    %c0_i32 = arith.constant 0 : i32
    %c0_i32_0 = arith.constant 0 : i32
    %c0_i32_1 = arith.constant 0 : i32
    return %c0_i32, %c0_i32_0 : i32, i32
  }
  func.func @transform_2(%arg0: i32) -> (i32, i32) {
    %c0_i32 = arith.constant 0 : i32
    %c0_i32_0 = arith.constant 0 : i32
    %c0_i32_1 = arith.constant 0 : i32
    return %c0_i32, %c0_i32_0 : i32, i32
  }
  func.func @transform_3(%arg0: i32) -> (i32, i32) {
    %c0_i32 = arith.constant 0 : i32
    %c0_i32_0 = arith.constant 0 : i32
    return %c0_i32, %arg0 : i32, i32
  }
}

</mosaic_0001>

<llo_original>
// kernel: spatial_grads.1
$region0: #{spatial_grads.1}
  #allocation0 [shape = 'u32[]', space=smem, size = 0x4, offset = 0x4, fixed_abs, tag = 'smem constant byte address 0x4 - core index']
  #allocation1 [shape = 'u32[72,128]{1,0:T(1,128)}', space=vmem, size = 0x9000, scoped, tag = 'internal scratch']
  %s0 = inlined_call_operand.vmem [shape: f32[4,256], index: 0, kind: input, shape index: {}]
  %s1 = inlined_call_operand.vmem [shape: f32[32,4], index: 1, kind: input, shape index: {}]
  %s2 = inlined_call_operand.vmem [shape: f32[3,32], index: 2, kind: input, shape index: {}]
  %s3 = inlined_call_operand.hbm [shape: f32[3,256], index: 3, kind: output, shape index: {}]
  %s4 = sld [smem:[#allocation0]]
  $region45: #{spatial_grads.1} parent=0
    _
  %s6 = ssub.s32 1, %s4
  %s7 = scalar_select 0, %s6, %s4
  $region1: #{spatial_grads.1} parent=0
    #allocation2 [shape = 'u8[4096]{0}', space=vmem, size = 0x1000, scoped, tag = 'output window, operand 0']
    #allocation3 [shape = 's32[2]{0}', space=sflag, size = 0x8, scoped, tag = 'scoped memory for spatial_grads.1']
    %8 = vsyncpa [#allocation3], 0
    %s9 = scalar_lea.sflag [#allocation3], 1
    %10 = vsyncpa %s9, 0
    loop: start=0, step=1, limit=4
    $region2: #{spatial_grads.1} parent=1 // loop_pre_header
      _
    $region3: #{spatial_grads.1} parent=1 // loop_header
      %s12 = sphi 0, %s16
      %p13 = scmp.ge.s32.totalorder %s12, 4
      %s22 = sphi 0, %s24
      %s25 = sphi 0, %s22
      %s26 = sphi 0, %s25
      %s42 = sphi 0, %s26
      %s46 = sphi 0, %s46
      %s48 = sphi 0, %s46
      %s49 = sphi 0, %s48
      %s63 = sphi 0, %s49
      %s67 = sphi 0, %s67
      %s69 = sphi 0, %s67
      %s70 = sphi 0, %s69
      %s84 = sphi 0, %s70
      %s90 = sphi 0, %s92
      %s93 = sphi 0, %s90
      %s94 = sphi 0, %s93
      %s110 = sphi 0, %s94
    $region4: #{spatial_grads.1} parent=1 // loop_header_branch
      %15 = sbr.rel (%p13) target = $region8
    $region5: #{spatial_grads.1} parent=1 // loop_body
      %s17 = ssub.s32 %s12, 1
      %s18 = ssub.s32 %s12, 2
      %s19 = sadd.s32 %s12, 1
      %s20 = ssub.s32 %s12, %s19
      %p21 = scmp.eq.s32.totalorder %s20, 0
      %s23 = sadd.s32 %s22, 1
      %s24 = scalar_select %p21, %s22, %s23
      %p27 = pneg %p21
      %p28 = scmp.eq.s32.totalorder %s12, 1
      %p29 = por %p27, %p28
      %p30 = scmp.ne.s32.totalorder %s22, %s25
      %p31 = scmp.eq.s32.totalorder %s12, 0
      %p32 = por %p30, %p31
      %p33 = scmp.ne.s32.totalorder %s22, %s25
      %p34 = scmp.eq.s32.totalorder %s17, 1
      %p35 = por %p33, %p34
      %p36 = scmp.ne.s32.totalorder %s25, %s26
      %p37 = scmp.eq.s32.totalorder %s17, 0
      %p38 = por %p36, %p37
      %p39 = scmp.ne.s32.totalorder %s25, %s26
      %p40 = scmp.eq.s32.totalorder %s18, 1
      %p41 = por %p39, %p40
      %p43 = scmp.ne.s32.totalorder %s26, %s42
      %p44 = scmp.eq.s32.totalorder %s18, 0
      %p45 = por %p43, %p44
      %s47 = sadd.s32 %s46, 1
      %p50 = scmp.eq.s32.totalorder %s12, 1
      %p51 = scmp.ne.s32.totalorder %s46, %s48
      %p52 = scmp.eq.s32.totalorder %s12, 0
      %p53 = por %p51, %p52
      %p54 = scmp.ne.s32.totalorder %s46, %s48
      %p55 = scmp.eq.s32.totalorder %s17, 1
      %p56 = por %p54, %p55
      %p57 = scmp.ne.s32.totalorder %s48, %s49
      %p58 = scmp.eq.s32.totalorder %s17, 0
      %p59 = por %p57, %p58
      %p60 = scmp.ne.s32.totalorder %s48, %s49
      %p61 = scmp.eq.s32.totalorder %s18, 1
      %p62 = por %p60, %p61
      %p64 = scmp.ne.s32.totalorder %s49, %s63
      %p65 = scmp.eq.s32.totalorder %s18, 0
      %p66 = por %p64, %p65
      %s68 = sadd.s32 %s67, 1
      %p71 = scmp.eq.s32.totalorder %s12, 1
      %p72 = scmp.ne.s32.totalorder %s67, %s69
      %p73 = scmp.eq.s32.totalorder %s12, 0
      %p74 = por %p72, %p73
      %p75 = scmp.ne.s32.totalorder %s67, %s69
      %p76 = scmp.eq.s32.totalorder %s17, 1
      %p77 = por %p75, %p76
      %p78 = scmp.ne.s32.totalorder %s69, %s70
      %p79 = scmp.eq.s32.totalorder %s17, 0
      %p80 = por %p78, %p79
      %p81 = scmp.ne.s32.totalorder %s69, %s70
      %p82 = scmp.eq.s32.totalorder %s18, 1
      %p83 = por %p81, %p82
      %p85 = scmp.ne.s32.totalorder %s70, %s84
      %p86 = scmp.eq.s32.totalorder %s18, 0
      %p87 = por %p85, %p86
      %s88 = ssub.s32 %s12, %s19
      %p89 = scmp.eq.s32.totalorder %s88, 0
      %s91 = sadd.s32 %s90, 1
      %s92 = scalar_select %p89, %s90, %s91
      %p95 = pneg %p89
      %p96 = scmp.eq.s32.totalorder %s12, 1
      %p97 = por %p95, %p96
      %p98 = scmp.ne.s32.totalorder %s90, %s93
      %p99 = scmp.eq.s32.totalorder %s12, 0
      %p100 = por %p98, %p99
      %p101 = scmp.ne.s32.totalorder %s90, %s93
      %p102 = scmp.eq.s32.totalorder %s17, 1
      %p103 = por %p101, %p102
      %p104 = scmp.ne.s32.totalorder %s93, %s94
      %p105 = scmp.eq.s32.totalorder %s17, 0
      %p106 = por %p104, %p105
      %p107 = scmp.ne.s32.totalorder %s93, %s94
      %p108 = scmp.eq.s32.totalorder %s18, 1
      %p109 = por %p107, %p108
      %p111 = scmp.ne.s32.totalorder %s94, %s110
      %p112 = scmp.eq.s32.totalorder %s18, 0
      %p113 = por %p111, %p112
      %p114 = scmp.le.s32.totalorder 1, %s12
      %p115 = scmp.lt.s32.totalorder %s12, 3
      %p116 = pnand %p114, %p115
      %p117 = pneg %p116
      // Predicated region
      $region9: #{spatial_grads.1} parent=5 // pred_check
        _
      $region10: #{spatial_grads.1} parent=5 // pred_check_branch
        %119 = sbr.rel (%p116) target = $region12
      $region11: #{spatial_grads.1} parent=5 // pred_region
        %s120 = ssub.s32 %s12, 1
        // Predicated region
        $region13: #{spatial_grads.1} parent=11 // pred_check
          %p121 = pneg %p59
        $region14: #{spatial_grads.1} parent=11 // pred_check_branch
          %123 = sbr.rel (%p121) target = $region16
        $region15: #{spatial_grads.1} parent=11 // pred_region
          _
        $region16: #{spatial_grads.1} parent=11 // pred_fallthru
          _
        // Predicated region
        $region17: #{spatial_grads.1} parent=11 // pred_check
          %p124 = pneg %p80
        $region18: #{spatial_grads.1} parent=11 // pred_check_branch
          %126 = sbr.rel (%p124) target = $region20
        $region19: #{spatial_grads.1} parent=11 // pred_region
          _
        $region20: #{spatial_grads.1} parent=11 // pred_fallthru
          _
      $region12: #{spatial_grads.1} parent=5 // pred_fallthru
        _
      %p127 = scmp.lt.s32.totalorder %s12, 2
      // Predicated region
      $region21: #{spatial_grads.1} parent=5 // pred_check
        %p128 = pneg %p127
      $region22: #{spatial_grads.1} parent=5 // pred_check_branch
        %130 = sbr.rel (%p128) target = $region24
      $region23: #{spatial_grads.1} parent=5 // pred_region
        // Predicated region
        $region25: #{spatial_grads.1} parent=23 // pred_check
          %p131 = pneg %p32
        $region26: #{spatial_grads.1} parent=23 // pred_check_branch
          %133 = sbr.rel (%p131) target = $region28
        $region27: #{spatial_grads.1} parent=23 // pred_region
          %p134 = scmp.lt.s32.totalorder %s12, 1
          %s135 = scalar_select %p134, %s12, 1
          %s136 = smul.addr %s135, 4
          %s137 = scalar_lea.vmem %s0, %s136
        $region28: #{spatial_grads.1} parent=23 // pred_fallthru
          _
      $region24: #{spatial_grads.1} parent=5 // pred_fallthru
        _
      %p138 = scmp.le.s32.totalorder 1, %s12
      %p139 = scmp.lt.s32.totalorder %s12, 3
      %p140 = pnand %p138, %p139
      %p141 = pneg %p140
      // Predicated region
      $region29: #{spatial_grads.1} parent=5 // pred_check
        _
      $region30: #{spatial_grads.1} parent=5 // pred_check_branch
        %143 = sbr.rel (%p140) target = $region32
      $region31: #{spatial_grads.1} parent=5 // pred_region
        %s144 = ssub.s32 %s12, 1
        %p145 = scmp.lt.s32.totalorder %s17, 1
        %s146 = scalar_select %p145, %s17, 1
        %s147 = smul.addr %s146, 4
        %s148 = scalar_lea.vmem %s0, %s147
        %p149 = pneg %p38
        %p150 = pneg %p35
        %p151 = pneg %p59
        %p152 = pneg %p56
        %p153 = pneg %p80
        %p154 = pneg %p77
        %p155 = pneg %p106
        %p156 = pneg %p103
        %s157 = sand.u32 %s93, 1
        %s158 = scalar_lea.sflag [#allocation3], %s157
        %s159 = sand.u32 %s93, 1
        %s160 = smul.addr %s159, 4
        %s161 = scalar_lea.vmem [#allocation2], %s160
        %p162 = scmp.lt.s32.totalorder %s17, 1
        %s163 = scalar_select %p162, %s17, 1
        %s164 = smul.addr %s163, 4
        %s165 = scalar_lea.vmem %s0, %s164
        %v166 = vld [vmem:[%s1] sm:$0xff]
        %v167 = vld [vmem:[%s1 + $0x8] sm:$0xff]
        %v168 = vld [vmem:[%s1 + $0x10] sm:$0xff]
        %v169 = vld [vmem:[%s1 + $0x18] sm:$0xff]
        %v170 = vld [vmem:[%s165] sm:$0xf]
        %vm171 = vcmask 31744
        %v173 = vsel %vm171, %v166, 0
        %v176 = vsel %vm171, %v167, 0
        %v179 = vsel %vm171, %v168, 0
        %v182 = vsel %vm171, %v169, 0
        %vm184 = vcmask 1043456
        %v186 = vsel %vm184, %v170, 0
        %188 = vmatpush.msra.mxu0 0.0
        %189 = vmatpush.msra.mxu0 0.0
        %190 = vmatpush.msra.mxu0 0.0
        %191 = vmatpush.msra.mxu0 0.0
        %192 = vmatpush.msra.mxu0 0.0
        %193 = vmatpush.msra.mxu0 0.0
        %194 = vmatpush.msra.mxu0 0.0
        %195 = vmatpush.msra.mxu0 0.0
        %196 = vmatpush.msra.mxu0 0.0
        %197 = vmatpush.msra.mxu0 0.0
        %198 = vmatpush.msra.mxu0 0.0
        %199 = vmatpush.msra.mxu0 0.0
        %200 = vmatpush.msra.mxu0 0.0
        %201 = vmatpush.msra.mxu0 0.0
        %202 = vmatpush.msra.mxu0 0.0
        %203 = vmatpush.msra.mxu0 %v186
        %204 = vmatmul.f32.gmra.mxu0 %v173
        %v205 = vpop.f32.mrf.mxu0
        %v206 = vadd.f32 0.0, %v205
        %207 = vmatmul.f32.gmra.mxu0 %v176
        %v208 = vpop.f32.mrf.mxu0
        %v209 = vadd.f32 0.0, %v208
        %210 = vmatmul.f32.gmra.mxu0 %v179
        %v211 = vpop.f32.mrf.mxu0
        %v212 = vadd.f32 0.0, %v211
        %213 = vmatmul.f32.gmra.mxu0 %v182
        %v214 = vpop.f32.mrf.mxu0
        %v215 = vadd.f32 0.0, %v214
        %216 = vdwg.mxu0
        %v217 = vtanh.pop %v206
        %v218 = vtanh.pop %v209
        %v219 = vtanh.pop %v212
        %v220 = vtanh.pop %v215
        %v221 = vmul.f32 %v217, %v217
        %v222 = vmul.f32 %v218, %v218
        %v223 = vmul.f32 %v219, %v219
        %v224 = vmul.f32 %v220, %v220
        %v225 = vsub.f32 1.0, %v221
        %v226 = vsub.f32 1.0, %v222
        %v227 = vsub.f32 1.0, %v223
        %v228 = vsub.f32 1.0, %v224
        %v229 = vld [vmem:[%s2] sm:$0x7]
        %vm230 = vcmask 261120
        %v232 = vsel %vm230, %v229, 0
        %234 = vmatpush.msra.mxu0 0.0
        %235 = vmatpush.msra.mxu0 0.0
        %236 = vmatpush.msra.mxu0 0.0
        %237 = vmatpush.msra.mxu0 0.0
        %238 = vmatpush.msra.mxu0 0.0
        %239 = vmatpush.msra.mxu0 0.0
        %240 = vmatpush.msra.mxu0 0.0
        %241 = vmatpush.msra.mxu0 0.0
        %242 = vmatpush.msra.mxu0 0.0
        %243 = vmatpush.msra.mxu0 0.0
        %244 = vmatpush.msra.mxu0 0.0
        %245 = vmatpush.msra.mxu0 0.0
        %246 = vmatpush.msra.mxu0 %v228
        %247 = vmatpush.msra.mxu0 %v227
        %248 = vmatpush.msra.mxu0 %v226
        %249 = vmatpush.msra.mxu0 %v225
        %250 = vmatmul.f32.gmra.mxu0 %v232
        %v251 = vpop.f32.mrf.mxu0
        %v252 = vadd.f32 0.0, %v251
        %253 = vdwg.mxu0
        %254 = vst [vmem:[%s161] sm:$0x7] %v252
        %s255 = sand.u32 %s93, 1
        %s256 = scalar_lea.sflag [#allocation3], %s255
        %s257 = sand.u32 %s93, 1
        %s258 = smul.addr %s257, 4
        %s259 = scalar_lea.vmem [#allocation2], %s258
        // Predicated region
        $region33: #{spatial_grads.1} parent=31 // pred_check
          %p260 = pneg %p103
        $region34: #{spatial_grads.1} parent=31 // pred_check_branch
          %262 = sbr.rel (%p260) target = $region36
        $region35: #{spatial_grads.1} parent=31 // pred_region
          %264 = vsyncadd %s256, 0
          %s265 = smul.addr %s17, 4
          %s266 = scalar_lea.hbm %s3, %s265
          %s268 = sshll.u32 %s259, 4
          %s269 = int_to_ptr.vmem [resolvable:$true] %s268
          %s270 = sshll.u32 %s266, 4
          %s271 = int_to_ptr.hbm [resolvable:$true] %s270
          %273 = dma.vmem_to_hbm [thread:$0]  %s269, 64, %s271, %s256
        $region36: #{spatial_grads.1} parent=31 // pred_fallthru
          _
      $region32: #{spatial_grads.1} parent=5 // pred_fallthru
        _
      %p274 = scmp.le.s32.totalorder 2, %s12
      // Predicated region
      $region37: #{spatial_grads.1} parent=5 // pred_check
        %p275 = pneg %p274
      $region38: #{spatial_grads.1} parent=5 // pred_check_branch
        %277 = sbr.rel (%p275) target = $region40
      $region39: #{spatial_grads.1} parent=5 // pred_region
        %s278 = ssub.s32 %s12, 2
        // Predicated region
        $region41: #{spatial_grads.1} parent=39 // pred_check
          %p279 = pneg %p109
        $region42: #{spatial_grads.1} parent=39 // pred_check_branch
          %281 = sbr.rel (%p279) target = $region44
        $region43: #{spatial_grads.1} parent=39 // pred_region
          %s282 = sand.u32 %s94, 1
          %s283 = scalar_lea.sflag [#allocation3], %s282
          %s284 = sand.u32 %s94, 1
          %s285 = smul.addr %s284, 4
          %s286 = scalar_lea.vmem [#allocation2], %s285
          %288 = dma.done %s283, 64
        $region44: #{spatial_grads.1} parent=39 // pred_fallthru
          _
      $region40: #{spatial_grads.1} parent=5 // pred_fallthru
        _
    $region6: #{spatial_grads.1} parent=1 // loop_footer
      %s16 = sadd.s32 1, %s12
    $region7: #{spatial_grads.1} parent=1 // loop_footer_branch
      %11 = sbr.rel target = $region3
    $region8: #{spatial_grads.1} parent=1 // loop_exit
      _
    %289 = vsyncpa [#allocation3], 1
    %s290 = scalar_lea.sflag [#allocation3], 1
    %291 = vsyncpa %s290, 1

</llo_original>
